<compile_context>
chip_gen: v6e
topology: v6e:2x2x1
jax: 0.10.0
libtpu: 0.0.40
codegen_flags: <defaults>
</compile_context>

<pallas_src>
import math

import jax
import jax.numpy as jnp
from jax.experimental import pallas as pl
from jax.experimental.pallas import tpu as pltpu


_LANE = 128
_SUBLANE = 8
_BLOCK_BYTE_BUDGET = 8 * 1024 * 1024   # ~8 MiB per block (4 pipeline bufs ~= 32 MiB)
_VMEM_LIMIT_BYTES = 48 << 20           # < 64 MiB physical VMEM on v7x; fine on v5e/v6e


def _copy_kernel(x_ref, o_ref):
    # Pure lane-dense 2D copy of one tile.
    o_ref[...] = x_ref[...]


def _round_up(v, unit):
    return ((v + unit - 1) // unit) * unit


def view_flatten(x):
    """Equivalent of torch's x.view(x.shape[0], -1).

    The flatten itself is metadata-only (jnp.reshape); the data movement is a
    tiled, in-place Pallas TPU copy over the flattened 2D slab.
    """
    n = x.shape[0]
    flat = int(math.prod(x.shape[1:])) if x.ndim > 1 else 1

    # Metadata-only, row-major flatten (identical ordering to torch .view).
    x2d = x.reshape(n, flat)

    # Degenerate shapes: lane width < 128 would force fully-masked stores for
    # a semantically-free op -> just return the reshape.
    if n == 0 or flat < _LANE:
        return x2d

    itemsize = jnp.dtype(x.dtype).itemsize
    # dtype-aware sublane packing: 8 rows (f32/i32), 16 (bf16/f16), 32 (i8/fp8).
    row_unit = max(_SUBLANE, (_SUBLANE * 4) // itemsize)

    row_bytes = flat * itemsize

    if row_bytes <= _BLOCK_BYTE_BUDGET:
        # Full-width, fully-contiguous row slabs; 1-D grid over rows only.
        tc = flat
        rows_per_block = max(1, _BLOCK_BYTE_BUDGET // row_bytes)
        tr = max(row_unit, (rows_per_block // row_unit) * row_unit)
        if tr >= n:
            if n >= 2 * row_unit and n * row_bytes > (4 << 20):
                # Keep >= 2 row blocks so both v7x TensorCores get work.
                tr = _round_up(pl.cdiv(n, 2), row_unit)
            else:
                tr = n  # full extent of the row dim: always a legal block shape
        grid = (pl.cdiv(n, tr),)
        in_specs = [pl.BlockSpec((tr, tc), lambda i: (i, 0))]
        out_specs = pl.BlockSpec((tr, tc), lambda i: (i, 0))
        semantics = ("parallel",)
    else:
        # Single row-slab too big: lane-dense column tiling with a cdiv grid.
        tr = row_unit if n >= row_unit else n
        tc = (_BLOCK_BYTE_BUDGET // (tr * itemsize)) // _LANE * _LANE
        tc = max(_LANE, min(tc, (flat // _LANE) * _LANE))
        grid = (pl.cdiv(n, tr), pl.cdiv(flat, tc))
        in_specs = [pl.BlockSpec((tr, tc), lambda i, j: (i, j))]
        out_specs = pl.BlockSpec((tr, tc), lambda i, j: (i, j))
        semantics = ("parallel", "parallel")

    out_shape = jax.ShapeDtypeStruct((n, flat), x.dtype)

    return pl.pallas_call(
        _copy_kernel,
        out_shape=out_shape,
        grid=grid,
        in_specs=in_specs,
        out_specs=out_specs,
        input_output_aliases={0: 0},  # in-place identity copy: no second HBM slab
        cost_estimate=pl.CostEstimate(
            flops=0,
            transcendentals=0,
            bytes_accessed=2 * n * flat * itemsize,
        ),
        compiler_params=pltpu.CompilerParams(
            dimension_semantics=semantics,
            vmem_limit_bytes=_VMEM_LIMIT_BYTES,
        ),
    )(x2d)


if __name__ == "__main__":
    key = jax.random.PRNGKey(0)
    # Small NCHW input consistent with a conv-style model: batch=2, C=4, H=W=16.
    x = jax.random.normal(key, (2, 4, 16, 16), dtype=jnp.float32)

    # Reference computed before the kernel call (kernel may donate its input slab).
    ref = x.reshape(x.shape[0], -1)

    y = view_flatten(x)
    y = jax.block_until_ready(y)

    assert y.shape == ref.shape, (y.shape, ref.shape)
    assert y.dtype == ref.dtype, (y.dtype, ref.dtype)
    assert bool(jnp.array_equal(y, ref)), "Pallas view result mismatch"

    print("KERNEL_OK")
</pallas_src>

<mosaic_0001>
module attributes {stable_mosaic.version = 11 : i64} {
  func.func @_copy_kernel(%arg0: i32, %arg1: memref<2x1024xf32, #tpu.memory_space<vmem>>, %arg2: memref<2x1024xf32, #tpu.memory_space<vmem>>) attributes {dimension_semantics = [#tpu.dimension_semantics<parallel>], iteration_bounds = array<i64: 1>, scalar_prefetch = 0 : i64, scratch_operands = 0 : i64, tpu.core_type = #tpu.core_type<tc>, window_params = [{transform_indices = @transform_0, window_bounds = array<i64: 2, 1024>}, {transform_indices = @transform_1, window_bounds = array<i64: 2, 1024>}]} {
    %c0 = arith.constant 0 : index
    %c0_0 = arith.constant 0 : index
    %0 = vector.load %arg1[%c0, %c0_0] : memref<2x1024xf32, #tpu.memory_space<vmem>>, vector<2x1024xf32>
    %c0_1 = arith.constant 0 : index
    %c0_2 = arith.constant 0 : index
    %1 = vector.load %arg2[%c0_1, %c0_2] : memref<2x1024xf32, #tpu.memory_space<vmem>>, vector<2x1024xf32>
    tpu.vector_store %arg2[%c0_1, %c0_2], %0 {strides = array<i32>} : memref<2x1024xf32, #tpu.memory_space<vmem>>, vector<2x1024xf32>,
    return
  }
  func.func @transform_0(%arg0: i32) -> (i32, i32) {
    %c0_i32 = arith.constant 0 : i32
    %c0_i32_0 = arith.constant 0 : i32
    return %arg0, %c0_i32 : i32, i32
  }
  func.func @transform_1(%arg0: i32) -> (i32, i32) {
    %c0_i32 = arith.constant 0 : i32
    %c0_i32_0 = arith.constant 0 : i32
    return %arg0, %c0_i32 : i32, i32
  }
}

</mosaic_0001>

<llo_original>
// kernel: tpu_custom_call.1
$region0: #{tpu_custom_call.1}
  #allocation0 [shape = 'u32[]', space=smem, size = 0x4, offset = 0x4, fixed_abs, tag = 'smem constant byte address 0x4 - core index']
  #allocation1 [shape = 'u32[144,128]{1,0:T(1,128)}', space=vmem, size = 0x12000, scoped, tag = 'internal scratch']
  %s0 = inlined_call_operand.hbm [shape: f32[2,1024], index: 0, kind: input, shape index: {}, may-alias: {0,1}]
  %s1 = inlined_call_operand.hbm [shape: f32[2,1024], index: 1, kind: output, shape index: {}, may-alias: {0,1}]
  %s2 = sld [smem:[#allocation0]]
  $region18: #{tpu_custom_call.1} parent=0
    _
  %s4 = ssub.s32 1, %s2
  %s5 = scalar_select 0, %s4, %s2
  $region1: #{tpu_custom_call.1} parent=0
    #allocation2 [shape = 'u8[8192]{0}', space=vmem, size = 0x2000, scoped, tag = 'input window, operand 0, single buffered']
    #allocation3 [shape = 's32[1]{0}', space=sflag, size = 0x4, scoped, tag = 'scoped memory for tpu_custom_call.1']
    #allocation4 [shape = 's32[1]{0}', space=sflag, size = 0x4, scoped, tag = 'scoped memory for tpu_custom_call.1']
    #allocation5 [shape = 'u8[8192]{0}', space=vmem, size = 0x2000, scoped, tag = 'output window, operand 0, single buffered']
    %6 = vsyncpa [#allocation3], 0
    %7 = vsyncpa [#allocation4], 0
    // Predicated region
    $region2: #{tpu_custom_call.1} parent=1 // pred_check
      _
    $region3: #{tpu_custom_call.1} parent=1 // pred_check_branch
      %9 = sbr.rel (0) target = $region5
    $region4: #{tpu_custom_call.1} parent=1 // pred_region
      %s11 = ssub.s32 256, 256
      %12 = vsyncadd [#allocation3], %s11
      %s14 = sshll.u32 [#allocation2], 4
      %s15 = int_to_ptr.vmem [resolvable:$true] %s14
      %17 = dma.hbm_to_vmem [thread:$0]  %s0, 256, %s15, [#allocation3]
    $region5: #{tpu_custom_call.1} parent=1 // pred_fallthru
      _
    // Predicated region
    $region6: #{tpu_custom_call.1} parent=1 // pred_check
      _
    $region7: #{tpu_custom_call.1} parent=1 // pred_check_branch
      %19 = sbr.rel (0) target = $region9
    $region8: #{tpu_custom_call.1} parent=1 // pred_region
      %20 = dma.done [#allocation3], 256
    $region9: #{tpu_custom_call.1} parent=1 // pred_fallthru
      _
    %v21 = vld [vmem:[#allocation2] sm:$0xff]
    %v22 = vld [vmem:[#allocation2 + $0x8] sm:$0xff]
    %23 = vst [vmem:[#allocation5] sm:$0xff] %v21
    %24 = vst [vmem:[#allocation5 + $0x8] sm:$0xff] %v22
    // Predicated region
    $region10: #{tpu_custom_call.1} parent=1 // pred_check
      _
    $region11: #{tpu_custom_call.1} parent=1 // pred_check_branch
      %26 = sbr.rel (0) target = $region13
    $region12: #{tpu_custom_call.1} parent=1 // pred_region
      %s28 = ssub.s32 256, 256
      %29 = vsyncadd [#allocation4], %s28
      %s31 = sshll.u32 [#allocation5], 4
      %s32 = int_to_ptr.vmem [resolvable:$true] %s31
      %34 = dma.vmem_to_hbm [thread:$0]  %s32, 256, %s1, [#allocation4]
    $region13: #{tpu_custom_call.1} parent=1 // pred_fallthru
      _
    // Predicated region
    $region14: #{tpu_custom_call.1} parent=1 // pred_check
      _
    $region15: #{tpu_custom_call.1} parent=1 // pred_check_branch
      %36 = sbr.rel (0) target = $region17
    $region16: #{tpu_custom_call.1} parent=1 // pred_region
      %37 = dma.done [#allocation4], 256
    $region17: #{tpu_custom_call.1} parent=1 // pred_fallthru
      _
    %38 = vsyncpa [#allocation3], 1
    %39 = vsyncpa [#allocation4], 1

</llo_original>
